<compile_context>
chip_gen: v7x
topology: tpu7x:2x2x1
jax: 0.10.0
libtpu: 0.0.40
codegen_flags: <defaults>
</compile_context>

<pallas_src>
import jax
import jax.numpy as jnp
from jax.experimental import pallas as pl
from jax.experimental.pallas import tpu as pltpu


def _round_up(n, m):
    return ((n + m - 1) // m) * m


def mlp_kernel(x_ref, w1_ref, b1_ref, w2_ref, b2_ref, w3_ref, b3_ref,
               wm_ref, o_ref):
    x = x_ref[...]                                   # (T, 2)
    w1 = w1_ref[...]                                 # (2, 50)

    # Layer 1 has K=2: a matmul would waste an MXU push at the head of the
    # serial chain -- do it as two broadcast FMAs on the VPU instead.
    h = x[:, 0:1] * w1[0:1, :] + x[:, 1:2] * w1[1:2, :] + b1_ref[...]
    h = jnp.maximum(h, 0.0)

    h = jnp.dot(h, w2_ref[...], preferred_element_type=jnp.float32) + b2_ref[...]
    h = jnp.maximum(h, 0.0)
    h = jnp.dot(h, w3_ref[...], preferred_element_type=jnp.float32) + b3_ref[...]
    h = jnp.maximum(h, 0.0)
    o_ref[...] = jnp.dot(h, wm_ref[...], preferred_element_type=jnp.float32)


def neural_network_forward(x, params, *, tile_b=512):
    """x: (B, 2) float32 (any B >= 1). Returns (B, 33) float32."""
    w1, b1, w2, b2, w3, b3, wm = params
    B, Din = x.shape
    Dout = wm.shape[1]       # 33

    # Pick an effective tile: at least 8 rows (sublane granularity), no bigger
    # than the padded batch, and keep the grid length >= 2 when possible so the
    # "parallel" axis can shard across both TensorCores on v7x (no-op on
    # v5e/v6e single-TC chips).
    tile = max(8, min(int(tile_b), _round_up(B, 8)))
    if _round_up(B, tile) // tile < 2 and tile > 8:
        tile = max(8, _round_up(tile // 2, 8))

    # Ragged batch handling: pad to a tile multiple, slice back at the end.
    B_pad = _round_up(B, tile)
    if B_pad != B:
        x = jnp.pad(x, ((0, B_pad - B), (0, 0)))
    grid = (B_pad // tile,)

    # Weights/biases are tiny: replicate the full arrays in VMEM for every
    # batch tile (block_shape == full array shape, which is always legal).
    def full(shape):
        return pl.BlockSpec(shape, lambda i, _s=shape: tuple(0 for _ in _s))

    out = pl.pallas_call(
        mlp_kernel,
        out_shape=jax.ShapeDtypeStruct((B_pad, Dout), jnp.float32),
        grid_spec=pltpu.PrefetchScalarGridSpec(
            num_scalar_prefetch=0,
            grid=grid,
            in_specs=[
                pl.BlockSpec((tile, Din), lambda i: (i, 0)),   # x batch tile
                full(w1.shape), full(b1.shape),
                full(w2.shape), full(b2.shape),
                full(w3.shape), full(b3.shape),
                full(wm.shape),
            ],
            out_specs=pl.BlockSpec((tile, Dout), lambda i: (i, 0)),
        ),
        compiler_params=pltpu.CompilerParams(
            dimension_semantics=("parallel",)),
    )(x, w1, b1, w2, b2, w3, b3, wm)

    return out[:B]


def init_params(key):
    """Deterministic synthetic parameters matching the module's shapes."""
    ks = jax.random.split(key, 7)

    def uniform(k, shape, fan_in):
        bound = 1.0 / jnp.sqrt(fan_in)
        return jax.random.uniform(k, shape, jnp.float32, -bound, bound)

    w1 = uniform(ks[0], (2, 50), 2.0)
    b1 = uniform(ks[1], (1, 50), 2.0)
    w2 = uniform(ks[2], (50, 50), 50.0)
    b2 = uniform(ks[3], (1, 50), 50.0)
    w3 = uniform(ks[4], (50, 50), 50.0)
    b3 = uniform(ks[5], (1, 50), 50.0)
    wm = jax.random.normal(ks[6], (50, 33), jnp.float32)   # N(0, 1) Wmatrix
    return (w1, b1, w2, b2, w3, b3, wm)


def reference_forward(x, params):
    w1, b1, w2, b2, w3, b3, wm = params
    h = jnp.maximum(x @ w1 + b1, 0.0)
    h = jnp.maximum(h @ w2 + b2, 0.0)
    h = jnp.maximum(h @ w3 + b3, 0.0)
    return h @ wm


if __name__ == "__main__":
    key = jax.random.PRNGKey(0)
    k_x, k_p = jax.random.split(key)
    params = init_params(k_p)

    # Primary small test: B=16 (grid splits into 2 tiles of 8 rows).
    B = 16
    x = jax.random.normal(k_x, (B, 2), jnp.float32)
    out = jax.block_until_ready(neural_network_forward(x, params))
    ref = reference_forward(x, params)
    assert out.shape == (B, 33), out.shape
    assert jnp.allclose(out, ref, atol=1e-4, rtol=1e-4), \
        float(jnp.max(jnp.abs(out - ref)))

    # Ragged-batch test: B not a multiple of the tile (pad + slice path).
    B2 = 13
    x2 = jax.random.normal(k_x, (B2, 2), jnp.float32)
    out2 = jax.block_until_ready(neural_network_forward(x2, params))
    ref2 = reference_forward(x2, params)
    assert out2.shape == (B2, 33), out2.shape
    assert jnp.allclose(out2, ref2, atol=1e-4, rtol=1e-4), \
        float(jnp.max(jnp.abs(out2 - ref2)))

    print("KERNEL_OK")
</pallas_src>

<mosaic_0001>
module attributes {stable_mosaic.version = 11 : i64} {
  func.func @mlp_kernel(%arg0: i32, %arg1: memref<8x2xf32, #tpu.memory_space<vmem>>, %arg2: memref<2x50xf32, #tpu.memory_space<vmem>>, %arg3: memref<1x50xf32, #tpu.memory_space<vmem>>, %arg4: memref<50x50xf32, #tpu.memory_space<vmem>>, %arg5: memref<1x50xf32, #tpu.memory_space<vmem>>, %arg6: memref<50x50xf32, #tpu.memory_space<vmem>>, %arg7: memref<1x50xf32, #tpu.memory_space<vmem>>, %arg8: memref<50x33xf32, #tpu.memory_space<vmem>>, %arg9: memref<8x33xf32, #tpu.memory_space<vmem>>) attributes {dimension_semantics = [#tpu.dimension_semantics<parallel>], iteration_bounds = array<i64: 2>, scalar_prefetch = 0 : i64, scratch_operands = 0 : i64, tpu.core_type = #tpu.core_type<tc>, window_params = [{transform_indices = @transform_0, window_bounds = array<i64: 8, 2>}, {pipeline_mode = #tpu.pipeline_mode<synchronous>, transform_indices = @transform_1, window_bounds = array<i64: 2, 50>}, {pipeline_mode = #tpu.pipeline_mode<synchronous>, transform_indices = @transform_2, window_bounds = array<i64: 1, 50>}, {pipeline_mode = #tpu.pipeline_mode<synchronous>, transform_indices = @transform_3, window_bounds = array<i64: 50, 50>}, {pipeline_mode = #tpu.pipeline_mode<synchronous>, transform_indices = @transform_4, window_bounds = array<i64: 1, 50>}, {pipeline_mode = #tpu.pipeline_mode<synchronous>, transform_indices = @transform_5, window_bounds = array<i64: 50, 50>}, {pipeline_mode = #tpu.pipeline_mode<synchronous>, transform_indices = @transform_6, window_bounds = array<i64: 1, 50>}, {pipeline_mode = #tpu.pipeline_mode<synchronous>, transform_indices = @transform_7, window_bounds = array<i64: 50, 33>}, {transform_indices = @transform_8, window_bounds = array<i64: 8, 33>}]} {
    %c0 = arith.constant 0 : index
    %c0_0 = arith.constant 0 : index
    %0 = vector.load %arg1[%c0, %c0_0] : memref<8x2xf32, #tpu.memory_space<vmem>>, vector<8x2xf32>
    %c0_1 = arith.constant 0 : index
    %c0_2 = arith.constant 0 : index
    %1 = vector.load %arg2[%c0_1, %c0_2] : memref<2x50xf32, #tpu.memory_space<vmem>>, vector<2x50xf32>
    %2 = vector.extract_strided_slice %0 {offsets = [0, 0], sizes = [8, 1], strides = [1, 1]} : vector<8x2xf32> to vector<8x1xf32>
    %3 = vector.extract_strided_slice %1 {offsets = [0, 0], sizes = [1, 50], strides = [1, 1]} : vector<2x50xf32> to vector<1x50xf32>
    %4 = vector.broadcast %2 : vector<8x1xf32> to vector<8x50xf32>
    %5 = vector.broadcast %3 : vector<1x50xf32> to vector<8x50xf32>
    %6 = arith.mulf %4, %5 : vector<8x50xf32>
    %7 = vector.extract_strided_slice %0 {offsets = [0, 1], sizes = [8, 1], strides = [1, 1]} : vector<8x2xf32> to vector<8x1xf32>
    %8 = vector.extract_strided_slice %1 {offsets = [1, 0], sizes = [1, 50], strides = [1, 1]} : vector<2x50xf32> to vector<1x50xf32>
    %9 = vector.broadcast %7 : vector<8x1xf32> to vector<8x50xf32>
    %10 = vector.broadcast %8 : vector<1x50xf32> to vector<8x50xf32>
    %11 = arith.mulf %9, %10 : vector<8x50xf32>
    %12 = arith.addf %6, %11 : vector<8x50xf32>
    %c0_3 = arith.constant 0 : index
    %c0_4 = arith.constant 0 : index
    %13 = vector.load %arg3[%c0_3, %c0_4] : memref<1x50xf32, #tpu.memory_space<vmem>>, vector<1x50xf32>
    %14 = vector.broadcast %13 : vector<1x50xf32> to vector<8x50xf32>
    %15 = arith.addf %12, %14 : vector<8x50xf32>
    %cst = arith.constant 0.000000e+00 : f32
    %16 = vector.broadcast %cst : f32 to vector<8x50xf32>
    %17 = arith.maximumf %15, %16 : vector<8x50xf32>
    %c0_5 = arith.constant 0 : index
    %c0_6 = arith.constant 0 : index
    %18 = vector.load %arg4[%c0_5, %c0_6] : memref<50x50xf32, #tpu.memory_space<vmem>>, vector<50x50xf32>
    %cst_7 = arith.constant dense<0.000000e+00> : vector<8x50xf32>
    %19 = tpu.matmul %17, %18, %cst_7 {dimension_numbers = #tpu.dot_dimension_numbers<[1], [0], [0], [1], [0, 0, 1, 1], [], []>} : vector<8x50xf32>, vector<50x50xf32>, vector<8x50xf32> -> vector<8x50xf32>
    %c0_8 = arith.constant 0 : index
    %c0_9 = arith.constant 0 : index
    %20 = vector.load %arg5[%c0_8, %c0_9] : memref<1x50xf32, #tpu.memory_space<vmem>>, vector<1x50xf32>
    %21 = vector.broadcast %20 : vector<1x50xf32> to vector<8x50xf32>
    %22 = arith.addf %19, %21 : vector<8x50xf32>
    %cst_10 = arith.constant 0.000000e+00 : f32
    %23 = vector.broadcast %cst_10 : f32 to vector<8x50xf32>
    %24 = arith.maximumf %22, %23 : vector<8x50xf32>
    %c0_11 = arith.constant 0 : index
    %c0_12 = arith.constant 0 : index
    %25 = vector.load %arg6[%c0_11, %c0_12] : memref<50x50xf32, #tpu.memory_space<vmem>>, vector<50x50xf32>
    %cst_13 = arith.constant dense<0.000000e+00> : vector<8x50xf32>
    %26 = tpu.matmul %24, %25, %cst_13 {dimension_numbers = #tpu.dot_dimension_numbers<[1], [0], [0], [1], [0, 0, 1, 1], [], []>} : vector<8x50xf32>, vector<50x50xf32>, vector<8x50xf32> -> vector<8x50xf32>
    %c0_14 = arith.constant 0 : index
    %c0_15 = arith.constant 0 : index
    %27 = vector.load %arg7[%c0_14, %c0_15] : memref<1x50xf32, #tpu.memory_space<vmem>>, vector<1x50xf32>
    %28 = vector.broadcast %27 : vector<1x50xf32> to vector<8x50xf32>
    %29 = arith.addf %26, %28 : vector<8x50xf32>
    %cst_16 = arith.constant 0.000000e+00 : f32
    %30 = vector.broadcast %cst_16 : f32 to vector<8x50xf32>
    %31 = arith.maximumf %29, %30 : vector<8x50xf32>
    %c0_17 = arith.constant 0 : index
    %c0_18 = arith.constant 0 : index
    %32 = vector.load %arg8[%c0_17, %c0_18] : memref<50x33xf32, #tpu.memory_space<vmem>>, vector<50x33xf32>
    %cst_19 = arith.constant dense<0.000000e+00> : vector<8x33xf32>
    %33 = tpu.matmul %31, %32, %cst_19 {dimension_numbers = #tpu.dot_dimension_numbers<[1], [0], [0], [1], [0, 0, 1, 1], [], []>} : vector<8x50xf32>, vector<50x33xf32>, vector<8x33xf32> -> vector<8x33xf32>
    %c0_20 = arith.constant 0 : index
    %c0_21 = arith.constant 0 : index
    %34 = vector.load %arg9[%c0_20, %c0_21] : memref<8x33xf32, #tpu.memory_space<vmem>>, vector<8x33xf32>
    tpu.vector_store %arg9[%c0_20, %c0_21], %33 {strides = array<i32>} : memref<8x33xf32, #tpu.memory_space<vmem>>, vector<8x33xf32>,
    return
  }
  func.func @transform_0(%arg0: i32) -> (i32, i32) {
    %c0_i32 = arith.constant 0 : i32
    %c0_i32_0 = arith.constant 0 : i32
    return %arg0, %c0_i32 : i32, i32
  }
  func.func @transform_1(%arg0: i32) -> (i32, i32) {
    %c0_i32 = arith.constant 0 : i32
    %c0_i32_0 = arith.constant 0 : i32
    %c0_i32_1 = arith.constant 0 : i32
    return %c0_i32, %c0_i32_0 : i32, i32
  }
  func.func @transform_2(%arg0: i32) -> (i32, i32) {
    %c0_i32 = arith.constant 0 : i32
    %c0_i32_0 = arith.constant 0 : i32
    %c0_i32_1 = arith.constant 0 : i32
    return %c0_i32, %c0_i32_0 : i32, i32
  }
  func.func @transform_3(%arg0: i32) -> (i32, i32) {
    %c0_i32 = arith.constant 0 : i32
    %c0_i32_0 = arith.constant 0 : i32
    %c0_i32_1 = arith.constant 0 : i32
    return %c0_i32, %c0_i32_0 : i32, i32
  }
  func.func @transform_4(%arg0: i32) -> (i32, i32) {
    %c0_i32 = arith.constant 0 : i32
    %c0_i32_0 = arith.constant 0 : i32
    %c0_i32_1 = arith.constant 0 : i32
    return %c0_i32, %c0_i32_0 : i32, i32
  }
  func.func @transform_5(%arg0: i32) -> (i32, i32) {
    %c0_i32 = arith.constant 0 : i32
    %c0_i32_0 = arith.constant 0 : i32
    %c0_i32_1 = arith.constant 0 : i32
    return %c0_i32, %c0_i32_0 : i32, i32
  }
  func.func @transform_6(%arg0: i32) -> (i32, i32) {
    %c0_i32 = arith.constant 0 : i32
    %c0_i32_0 = arith.constant 0 : i32
    %c0_i32_1 = arith.constant 0 : i32
    return %c0_i32, %c0_i32_0 : i32, i32
  }
  func.func @transform_7(%arg0: i32) -> (i32, i32) {
    %c0_i32 = arith.constant 0 : i32
    %c0_i32_0 = arith.constant 0 : i32
    %c0_i32_1 = arith.constant 0 : i32
    return %c0_i32, %c0_i32_0 : i32, i32
  }
  func.func @transform_8(%arg0: i32) -> (i32, i32) {
    %c0_i32 = arith.constant 0 : i32
    %c0_i32_0 = arith.constant 0 : i32
    return %arg0, %c0_i32 : i32, i32
  }
}

</mosaic_0001>

<llo_original>
// kernel: tpu_custom_call.1
$region0: #{tpu_custom_call.1}
  #allocation0 [shape = 'u32[]', space=smem, size = 0x4, offset = 0x4, fixed_abs, tag = 'smem constant byte address 0x4 - core index']
  #allocation1 [shape = 'u32[144,128]{1,0:T(1,128)}', space=vmem, size = 0x12000, scoped, tag = 'internal scratch']
  %s0 = inlined_call_operand.vmem [shape: f32[16,2], index: 0, kind: input, shape index: {}]
  %s1 = inlined_call_operand.vmem [shape: f32[2,50], index: 1, kind: input, shape index: {}]
  %s2 = inlined_call_operand.vmem [shape: f32[1,50], index: 2, kind: input, shape index: {}]
  %s3 = inlined_call_operand.vmem [shape: f32[50,50], index: 3, kind: input, shape index: {}]
  %s4 = inlined_call_operand.vmem [shape: f32[1,50], index: 4, kind: input, shape index: {}]
  %s5 = inlined_call_operand.vmem [shape: f32[50,50], index: 5, kind: input, shape index: {}]
  %s6 = inlined_call_operand.vmem [shape: f32[1,50], index: 6, kind: input, shape index: {}]
  %s7 = inlined_call_operand.vmem [shape: f32[50,33], index: 7, kind: input, shape index: {}]
  %s8 = inlined_call_operand.hbm [shape: f32[16,33], index: 8, kind: output, shape index: {}]
  %s9 = sld [smem:[#allocation0]]
  $region65: #{tpu_custom_call.1} parent=0
    _
  %s11 = ssub.s32 1, %s9
  %s12 = scalar_select 0, %s11, %s9
  $region1: #{tpu_custom_call.1} parent=0
    #allocation2 [shape = 'u8[8192]{0}', space=vmem, size = 0x2000, scoped, tag = 'output window, operand 0']
    #allocation3 [shape = 's32[2]{0}', space=sflag, size = 0x8, scoped, tag = 'scoped memory for tpu_custom_call.1']
    %13 = vsyncpa [#allocation3], 0
    %s14 = scalar_lea.sflag [#allocation3], 1
    %15 = vsyncpa %s14, 0
    loop: start=0, step=1, limit=4
    $region2: #{tpu_custom_call.1} parent=1 // loop_pre_header
      _
    $region3: #{tpu_custom_call.1} parent=1 // loop_header
      %s17 = sphi 0, %s21
      %p18 = scmp.ge.s32.totalorder %s17, 4
      %s27 = sphi 0, %s29
      %s30 = sphi 0, %s27
      %s31 = sphi 0, %s30
      %s47 = sphi 0, %s31
      %s51 = sphi 0, %s51
      %s53 = sphi 0, %s51
      %s54 = sphi 0, %s53
      %s68 = sphi 0, %s54
      %s72 = sphi 0, %s72
      %s74 = sphi 0, %s72
      %s75 = sphi 0, %s74
      %s89 = sphi 0, %s75
      %s93 = sphi 0, %s93
      %s95 = sphi 0, %s93
      %s96 = sphi 0, %s95
      %s110 = sphi 0, %s96
      %s114 = sphi 0, %s114
      %s116 = sphi 0, %s114
      %s117 = sphi 0, %s116
      %s131 = sphi 0, %s117
      %s135 = sphi 0, %s135
      %s137 = sphi 0, %s135
      %s138 = sphi 0, %s137
      %s152 = sphi 0, %s138
      %s156 = sphi 0, %s156
      %s158 = sphi 0, %s156
      %s159 = sphi 0, %s158
      %s173 = sphi 0, %s159
      %s177 = sphi 0, %s177
      %s179 = sphi 0, %s177
      %s180 = sphi 0, %s179
      %s194 = sphi 0, %s180
      %s200 = sphi 0, %s202
      %s203 = sphi 0, %s200
      %s204 = sphi 0, %s203
      %s220 = sphi 0, %s204
    $region4: #{tpu_custom_call.1} parent=1 // loop_header_branch
      %20 = sbr.rel (%p18) target = $region8
    $region5: #{tpu_custom_call.1} parent=1 // loop_body
      %s22 = ssub.s32 %s17, 1
      %s23 = ssub.s32 %s17, 2
      %s24 = sadd.s32 %s17, 1
      %s25 = ssub.s32 %s17, %s24
      %p26 = scmp.eq.s32.totalorder %s25, 0
      %s28 = sadd.s32 %s27, 1
      %s29 = scalar_select %p26, %s27, %s28
      %p32 = pneg %p26
      %p33 = scmp.eq.s32.totalorder %s17, 1
      %p34 = por %p32, %p33
      %p35 = scmp.ne.s32.totalorder %s27, %s30
      %p36 = scmp.eq.s32.totalorder %s17, 0
      %p37 = por %p35, %p36
      %p38 = scmp.ne.s32.totalorder %s27, %s30
      %p39 = scmp.eq.s32.totalorder %s22, 1
      %p40 = por %p38, %p39
      %p41 = scmp.ne.s32.totalorder %s30, %s31
      %p42 = scmp.eq.s32.totalorder %s22, 0
      %p43 = por %p41, %p42
      %p44 = scmp.ne.s32.totalorder %s30, %s31
      %p45 = scmp.eq.s32.totalorder %s23, 1
      %p46 = por %p44, %p45
      %p48 = scmp.ne.s32.totalorder %s31, %s47
      %p49 = scmp.eq.s32.totalorder %s23, 0
      %p50 = por %p48, %p49
      %s52 = sadd.s32 %s51, 1
      %p55 = scmp.eq.s32.totalorder %s17, 1
      %p56 = scmp.ne.s32.totalorder %s51, %s53
      %p57 = scmp.eq.s32.totalorder %s17, 0
      %p58 = por %p56, %p57
      %p59 = scmp.ne.s32.totalorder %s51, %s53
      %p60 = scmp.eq.s32.totalorder %s22, 1
      %p61 = por %p59, %p60
      %p62 = scmp.ne.s32.totalorder %s53, %s54
      %p63 = scmp.eq.s32.totalorder %s22, 0
      %p64 = por %p62, %p63
      %p65 = scmp.ne.s32.totalorder %s53, %s54
      %p66 = scmp.eq.s32.totalorder %s23, 1
      %p67 = por %p65, %p66
      %p69 = scmp.ne.s32.totalorder %s54, %s68
      %p70 = scmp.eq.s32.totalorder %s23, 0
      %p71 = por %p69, %p70
      %s73 = sadd.s32 %s72, 1
      %p76 = scmp.eq.s32.totalorder %s17, 1
      %p77 = scmp.ne.s32.totalorder %s72, %s74
      %p78 = scmp.eq.s32.totalorder %s17, 0
      %p79 = por %p77, %p78
      %p80 = scmp.ne.s32.totalorder %s72, %s74
      %p81 = scmp.eq.s32.totalorder %s22, 1
      %p82 = por %p80, %p81
      %p83 = scmp.ne.s32.totalorder %s74, %s75
      %p84 = scmp.eq.s32.totalorder %s22, 0
      %p85 = por %p83, %p84
      %p86 = scmp.ne.s32.totalorder %s74, %s75
      %p87 = scmp.eq.s32.totalorder %s23, 1
      %p88 = por %p86, %p87
      %p90 = scmp.ne.s32.totalorder %s75, %s89
      %p91 = scmp.eq.s32.totalorder %s23, 0
      %p92 = por %p90, %p91
      %s94 = sadd.s32 %s93, 1
      %p97 = scmp.eq.s32.totalorder %s17, 1
      %p98 = scmp.ne.s32.totalorder %s93, %s95
      %p99 = scmp.eq.s32.totalorder %s17, 0
      %p100 = por %p98, %p99
      %p101 = scmp.ne.s32.totalorder %s93, %s95
      %p102 = scmp.eq.s32.totalorder %s22, 1
      %p103 = por %p101, %p102
      %p104 = scmp.ne.s32.totalorder %s95, %s96
      %p105 = scmp.eq.s32.totalorder %s22, 0
      %p106 = por %p104, %p105
      %p107 = scmp.ne.s32.totalorder %s95, %s96
      %p108 = scmp.eq.s32.totalorder %s23, 1
      %p109 = por %p107, %p108
      %p111 = scmp.ne.s32.totalorder %s96, %s110
      %p112 = scmp.eq.s32.totalorder %s23, 0
      %p113 = por %p111, %p112
      %s115 = sadd.s32 %s114, 1
      %p118 = scmp.eq.s32.totalorder %s17, 1
      %p119 = scmp.ne.s32.totalorder %s114, %s116
      %p120 = scmp.eq.s32.totalorder %s17, 0
      %p121 = por %p119, %p120
      %p122 = scmp.ne.s32.totalorder %s114, %s116
      %p123 = scmp.eq.s32.totalorder %s22, 1
      %p124 = por %p122, %p123
      %p125 = scmp.ne.s32.totalorder %s116, %s117
      %p126 = scmp.eq.s32.totalorder %s22, 0
      %p127 = por %p125, %p126
      %p128 = scmp.ne.s32.totalorder %s116, %s117
      %p129 = scmp.eq.s32.totalorder %s23, 1
      %p130 = por %p128, %p129
      %p132 = scmp.ne.s32.totalorder %s117, %s131
      %p133 = scmp.eq.s32.totalorder %s23, 0
      %p134 = por %p132, %p133
      %s136 = sadd.s32 %s135, 1
      %p139 = scmp.eq.s32.totalorder %s17, 1
      %p140 = scmp.ne.s32.totalorder %s135, %s137
      %p141 = scmp.eq.s32.totalorder %s17, 0
      %p142 = por %p140, %p141
      %p143 = scmp.ne.s32.totalorder %s135, %s137
      %p144 = scmp.eq.s32.totalorder %s22, 1
      %p145 = por %p143, %p144
      %p146 = scmp.ne.s32.totalorder %s137, %s138
      %p147 = scmp.eq.s32.totalorder %s22, 0
      %p148 = por %p146, %p147
      %p149 = scmp.ne.s32.totalorder %s137, %s138
      %p150 = scmp.eq.s32.totalorder %s23, 1
      %p151 = por %p149, %p150
      %p153 = scmp.ne.s32.totalorder %s138, %s152
      %p154 = scmp.eq.s32.totalorder %s23, 0
      %p155 = por %p153, %p154
      %s157 = sadd.s32 %s156, 1
      %p160 = scmp.eq.s32.totalorder %s17, 1
      %p161 = scmp.ne.s32.totalorder %s156, %s158
      %p162 = scmp.eq.s32.totalorder %s17, 0
      %p163 = por %p161, %p162
      %p164 = scmp.ne.s32.totalorder %s156, %s158
      %p165 = scmp.eq.s32.totalorder %s22, 1
      %p166 = por %p164, %p165
      %p167 = scmp.ne.s32.totalorder %s158, %s159
      %p168 = scmp.eq.s32.totalorder %s22, 0
      %p169 = por %p167, %p168
      %p170 = scmp.ne.s32.totalorder %s158, %s159
      %p171 = scmp.eq.s32.totalorder %s23, 1
      %p172 = por %p170, %p171
      %p174 = scmp.ne.s32.totalorder %s159, %s173
      %p175 = scmp.eq.s32.totalorder %s23, 0
      %p176 = por %p174, %p175
      %s178 = sadd.s32 %s177, 1
      %p181 = scmp.eq.s32.totalorder %s17, 1
      %p182 = scmp.ne.s32.totalorder %s177, %s179
      %p183 = scmp.eq.s32.totalorder %s17, 0
      %p184 = por %p182, %p183
      %p185 = scmp.ne.s32.totalorder %s177, %s179
      %p186 = scmp.eq.s32.totalorder %s22, 1
      %p187 = por %p185, %p186
      %p188 = scmp.ne.s32.totalorder %s179, %s180
      %p189 = scmp.eq.s32.totalorder %s22, 0
      %p190 = por %p188, %p189
      %p191 = scmp.ne.s32.totalorder %s179, %s180
      %p192 = scmp.eq.s32.totalorder %s23, 1
      %p193 = por %p191, %p192
      %p195 = scmp.ne.s32.totalorder %s180, %s194
      %p196 = scmp.eq.s32.totalorder %s23, 0
      %p197 = por %p195, %p196
      %s198 = ssub.s32 %s17, %s24
      %p199 = scmp.eq.s32.totalorder %s198, 0
      %s201 = sadd.s32 %s200, 1
      %s202 = scalar_select %p199, %s200, %s201
      %p205 = pneg %p199
      %p206 = scmp.eq.s32.totalorder %s17, 1
      %p207 = por %p205, %p206
      %p208 = scmp.ne.s32.totalorder %s200, %s203
      %p209 = scmp.eq.s32.totalorder %s17, 0
      %p210 = por %p208, %p209
      %p211 = scmp.ne.s32.totalorder %s200, %s203
      %p212 = scmp.eq.s32.totalorder %s22, 1
      %p213 = por %p211, %p212
      %p214 = scmp.ne.s32.totalorder %s203, %s204
      %p215 = scmp.eq.s32.totalorder %s22, 0
      %p216 = por %p214, %p215
      %p217 = scmp.ne.s32.totalorder %s203, %s204
      %p218 = scmp.eq.s32.totalorder %s23, 1
      %p219 = por %p217, %p218
      %p221 = scmp.ne.s32.totalorder %s204, %s220
      %p222 = scmp.eq.s32.totalorder %s23, 0
      %p223 = por %p221, %p222
      %p224 = scmp.le.s32.totalorder 1, %s17
      %p225 = scmp.lt.s32.totalorder %s17, 3
      %p226 = pnand %p224, %p225
      %p227 = pneg %p226
      // Predicated region
      $region9: #{tpu_custom_call.1} parent=5 // pred_check
        _
      $region10: #{tpu_custom_call.1} parent=5 // pred_check_branch
        %229 = sbr.rel (%p226) target = $region12
      $region11: #{tpu_custom_call.1} parent=5 // pred_region
        %s230 = ssub.s32 %s17, 1
        // Predicated region
        $region13: #{tpu_custom_call.1} parent=11 // pred_check
          %p231 = pneg %p64
        $region14: #{tpu_custom_call.1} parent=11 // pred_check_branch
          %233 = sbr.rel (%p231) target = $region16
        $region15: #{tpu_custom_call.1} parent=11 // pred_region
          _
        $region16: #{tpu_custom_call.1} parent=11 // pred_fallthru
          _
        // Predicated region
        $region17: #{tpu_custom_call.1} parent=11 // pred_check
          %p234 = pneg %p85
        $region18: #{tpu_custom_call.1} parent=11 // pred_check_branch
          %236 = sbr.rel (%p234) target = $region20
        $region19: #{tpu_custom_call.1} parent=11 // pred_region
          _
        $region20: #{tpu_custom_call.1} parent=11 // pred_fallthru
          _
        // Predicated region
        $region21: #{tpu_custom_call.1} parent=11 // pred_check
          %p237 = pneg %p106
        $region22: #{tpu_custom_call.1} parent=11 // pred_check_branch
          %239 = sbr.rel (%p237) target = $region24
        $region23: #{tpu_custom_call.1} parent=11 // pred_region
          _
        $region24: #{tpu_custom_call.1} parent=11 // pred_fallthru
          _
        // Predicated region
        $region25: #{tpu_custom_call.1} parent=11 // pred_check
          %p240 = pneg %p127
        $region26: #{tpu_custom_call.1} parent=11 // pred_check_branch
          %242 = sbr.rel (%p240) target = $region28
        $region27: #{tpu_custom_call.1} parent=11 // pred_region
          _
        $region28: #{tpu_custom_call.1} parent=11 // pred_fallthru
          _
        // Predicated region
        $region29: #{tpu_custom_call.1} parent=11 // pred_check
          %p243 = pneg %p148
        $region30: #{tpu_custom_call.1} parent=11 // pred_check_branch
          %245 = sbr.rel (%p243) target = $region32
        $region31: #{tpu_custom_call.1} parent=11 // pred_region
          _
        $region32: #{tpu_custom_call.1} parent=11 // pred_fallthru
          _
        // Predicated region
        $region33: #{tpu_custom_call.1} parent=11 // pred_check
          %p246 = pneg %p169
        $region34: #{tpu_custom_call.1} parent=11 // pred_check_branch
          %248 = sbr.rel (%p246) target = $region36
        $region35: #{tpu_custom_call.1} parent=11 // pred_region
          _
        $region36: #{tpu_custom_call.1} parent=11 // pred_fallthru
          _
        // Predicated region
        $region37: #{tpu_custom_call.1} parent=11 // pred_check
          %p249 = pneg %p190
        $region38: #{tpu_custom_call.1} parent=11 // pred_check_branch
          %251 = sbr.rel (%p249) target = $region40
        $region39: #{tpu_custom_call.1} parent=11 // pred_region
          _
        $region40: #{tpu_custom_call.1} parent=11 // pred_fallthru
          _
      $region12: #{tpu_custom_call.1} parent=5 // pred_fallthru
        _
      %p252 = scmp.lt.s32.totalorder %s17, 2
      // Predicated region
      $region41: #{tpu_custom_call.1} parent=5 // pred_check
        %p253 = pneg %p252
      $region42: #{tpu_custom_call.1} parent=5 // pred_check_branch
        %255 = sbr.rel (%p253) target = $region44
      $region43: #{tpu_custom_call.1} parent=5 // pred_region
        // Predicated region
        $region45: #{tpu_custom_call.1} parent=43 // pred_check
          %p256 = pneg %p37
        $region46: #{tpu_custom_call.1} parent=43 // pred_check_branch
          %258 = sbr.rel (%p256) target = $region48
        $region47: #{tpu_custom_call.1} parent=43 // pred_region
          %p259 = scmp.lt.s32.totalorder %s17, 1
          %s260 = scalar_select %p259, %s17, 1
          %s261 = smul.addr %s260, 8
          %s262 = scalar_lea.vmem %s0, %s261
        $region48: #{tpu_custom_call.1} parent=43 // pred_fallthru
          _
      $region44: #{tpu_custom_call.1} parent=5 // pred_fallthru
        _
      %p263 = scmp.le.s32.totalorder 1, %s17
      %p264 = scmp.lt.s32.totalorder %s17, 3
      %p265 = pnand %p263, %p264
      %p266 = pneg %p265
      // Predicated region
      $region49: #{tpu_custom_call.1} parent=5 // pred_check
        _
      $region50: #{tpu_custom_call.1} parent=5 // pred_check_branch
        %268 = sbr.rel (%p265) target = $region52
      $region51: #{tpu_custom_call.1} parent=5 // pred_region
        %s269 = ssub.s32 %s17, 1
        %p270 = scmp.lt.s32.totalorder %s22, 1
        %s271 = scalar_select %p270, %s22, 1
        %s272 = smul.addr %s271, 8
        %s273 = scalar_lea.vmem %s0, %s272
        %p274 = pneg %p43
        %p275 = pneg %p40
        %p276 = pneg %p64
        %p277 = pneg %p61
        %p278 = pneg %p85
        %p279 = pneg %p82
        %p280 = pneg %p106
        %p281 = pneg %p103
        %p282 = pneg %p127
        %p283 = pneg %p124
        %p284 = pneg %p148
        %p285 = pneg %p145
        %p286 = pneg %p169
        %p287 = pneg %p166
        %p288 = pneg %p190
        %p289 = pneg %p187
        %p290 = pneg %p216
        %p291 = pneg %p213
        %s292 = sand.u32 %s203, 1
        %s293 = scalar_lea.sflag [#allocation3], %s292
        %s294 = sand.u32 %s203, 1
        %s295 = smul.addr %s294, 8
        %s296 = scalar_lea.vmem [#allocation2], %s295
        %p297 = scmp.lt.s32.totalorder %s22, 1
        %s298 = scalar_select %p297, %s22, 1
        %s299 = smul.addr %s298, 8
        %s300 = scalar_lea.vmem %s0, %s299
        %v301 = vld [vmem:[%s300] sm:$0xff]
        %v302 = vld [vmem:[%s1] sm:$0x3]
        %304 = vset.pattern.permute.xlu0 0
        %305 = vperm.xlu0 %304, %v301
        %v306 = vpop.permute.xlu0 %305
        %v308 = vlaneseq
        %v309 = vshrl.u32 %v308, 7
        %v310 = vsub.s32 0, %v309
        %v311 = vrot.slane %v302, %v310
        %v312 = vmul.f32 %v306, %v311
        %313 = vset.pattern.permute.xlu0 1
        %314 = vperm.xlu0 %313, %v301
        %v315 = vpop.permute.xlu0 %314
        %v317 = vlaneseq
        %v318 = vshrl.u32 %v317, 7
        %v319 = vsub.s32 1, %v318
        %v320 = vrot.slane %v302, %v319
        %v321 = vmul.f32 %v315, %v320
        %v322 = vadd.f32 %v312, %v321
        %v323 = vld [vmem:[%s2] sm:$0x1]
        %v325 = vlaneseq
        %v326 = vshrl.u32 %v325, 7
        %v327 = vsub.s32 0, %v326
        %v328 = vrot.slane %v323, %v327
        %v330 = vadd.f32 %v322, %v328
        %v331 = vmax.f32 %v330, 0.0
        %v332 = vld [vmem:[%s3] sm:$0xff]
        %v333 = vld [vmem:[%s3 + $0x8] sm:$0xff]
        %v334 = vld [vmem:[%s3 + $0x10] sm:$0xff]
        %v335 = vld [vmem:[%s3 + $0x18] sm:$0xff]
        %v336 = vld [vmem:[%s3 + $0x20] sm:$0xff]
        %v337 = vld [vmem:[%s3 + $0x28] sm:$0xff]
        %v338 = vld [vmem:[%s3 + $0x30] sm:$0x3]
        %v339 = vld [vmem:[%s4] sm:$0x1]
        %v341 = vlaneseq
        %v342 = vshrl.u32 %v341, 7
        %v343 = vsub.s32 0, %v342
        %v344 = vrot.slane %v339, %v343
        %vm346 = vcmask 408576
        %v348 = vsel %vm346, %v331, 0
        %vm350 = vcmask 1041408
        %v352 = vsel %vm350, %v338, 0
        %354 = vmatprep.subr.mxu0 0.0
        %355 = vmatpush1.msra.mxu0 %v332
        %356 = vmatprep.subr.mxu0 0.0
        %357 = vmatpush1.msra.mxu0 %v333
        %358 = vmatprep.subr.mxu0 0.0
        %359 = vmatpush1.msra.mxu0 %v334
        %360 = vmatprep.subr.mxu0 0.0
        %361 = vmatpush1.msra.mxu0 %v335
        %362 = vmatprep.subr.mxu0 0.0
        %363 = vmatpush1.msra.mxu0 %v336
        %364 = vmatprep.subr.mxu0 0.0
        %365 = vmatpush1.msra.mxu0 %v337
        %366 = vmatprep.subr.mxu0 0.0
        %367 = vmatpush1.msra.mxu0 %v352
        %368 = vmatprep.subr.mxu0 0.0
        %369 = vmatpush1.msra.mxu0 0.0
        %370 = vmatprep.subr.mxu0 0.0
        %371 = vmatpush1.msra.mxu0 0.0
        %372 = vmatprep.subr.mxu0 0.0
        %373 = vmatpush1.msra.mxu0 0.0
        %374 = vmatprep.subr.mxu0 0.0
        %375 = vmatpush1.msra.mxu0 0.0
        %376 = vmatprep.subr.mxu0 0.0
        %377 = vmatpush1.msra.mxu0 0.0
        %378 = vmatprep.subr.mxu0 0.0
        %379 = vmatpush1.msra.mxu0 0.0
        %380 = vmatprep.subr.mxu0 0.0
        %381 = vmatpush1.msra.mxu0 0.0
        %382 = vmatprep.subr.mxu0 0.0
        %383 = vmatpush1.msra.mxu0 0.0
        %384 = vmatprep.subr.mxu0 0.0
        %385 = vmatpush1.msra.mxu0 0.0
        %386 = vmatprep.subr.mxu0 0.0
        %387 = vmatpush1.msra.mxu0 0.0
        %388 = vmatprep.subr.mxu0 0.0
        %389 = vmatpush1.msra.mxu0 0.0
        %390 = vmatprep.subr.mxu0 0.0
        %391 = vmatpush1.msra.mxu0 0.0
        %392 = vmatprep.subr.mxu0 0.0
        %393 = vmatpush1.msra.mxu0 0.0
        %394 = vmatprep.subr.mxu0 0.0
        %395 = vmatpush1.msra.mxu0 0.0
        %396 = vmatprep.subr.mxu0 0.0
        %397 = vmatpush1.msra.mxu0 0.0
        %398 = vmatprep.subr.mxu0 0.0
        %399 = vmatpush1.msra.mxu0 0.0
        %400 = vmatprep.subr.mxu0 0.0
        %401 = vmatpush1.msra.mxu0 0.0
        %402 = vmatprep.subr.mxu0 0.0
        %403 = vmatpush1.msra.mxu0 0.0
        %404 = vmatprep.subr.mxu0 0.0
        %405 = vmatpush1.msra.mxu0 0.0
        %406 = vmatprep.subr.mxu0 0.0
        %407 = vmatpush1.msra.mxu0 0.0
        %408 = vmatprep.subr.mxu0 0.0
        %409 = vmatpush1.msra.mxu0 0.0
        %410 = vmatprep.subr.mxu0 0.0
        %411 = vmatpush1.msra.mxu0 0.0
        %412 = vmatprep.subr.mxu0 0.0
        %413 = vmatpush1.msra.mxu0 0.0
        %414 = vmatprep.subr.mxu0 0.0
        %415 = vmatpush1.msra.mxu0 0.0
        %416 = vmatprep.subr.mxu0 0.0
        %417 = vmatpush1.msra.mxu0 0.0
        %418 = vmatprep.mubr.f32.mxu0 0.0
        %419 = vmatmul.mubr.f32.gmra.mrb[0].mxu0 %v348
        %v420 = vpop.f32.mrb[0].mxu0
        %v421 = vadd.f32 %v344, %v420
        %v422 = vpop.f32.mrb[0].mxu0
        %423 = vdwg.mxu0
        %v424 = vmax.f32 %v421, 0.0
        %v425 = vld [vmem:[%s5] sm:$0xff]
        %v426 = vld [vmem:[%s5 + $0x8] sm:$0xff]
        %v427 = vld [vmem:[%s5 + $0x10] sm:$0xff]
        %v428 = vld [vmem:[%s5 + $0x18] sm:$0xff]
        %v429 = vld [vmem:[%s5 + $0x20] sm:$0xff]
        %v430 = vld [vmem:[%s5 + $0x28] sm:$0xff]
        %v431 = vld [vmem:[%s5 + $0x30] sm:$0x3]
        %v432 = vld [vmem:[%s6] sm:$0x1]
        %v434 = vlaneseq
        %v435 = vshrl.u32 %v434, 7
        %v436 = vsub.s32 0, %v435
        %v437 = vrot.slane %v432, %v436
        %v440 = vsel %vm346, %v424, 0
        %v443 = vsel %vm350, %v431, 0
        %445 = vmatprep.subr.mxu0 0.0
        %446 = vmatpush1.msra.mxu0 %v425
        %447 = vmatprep.subr.mxu0 0.0
        %448 = vmatpush1.msra.mxu0 %v426
        %449 = vmatprep.subr.mxu0 0.0
        %450 = vmatpush1.msra.mxu0 %v427
        %451 = vmatprep.subr.mxu0 0.0
        %452 = vmatpush1.msra.mxu0 %v428
        %453 = vmatprep.subr.mxu0 0.0
        %454 = vmatpush1.msra.mxu0 %v429
        %455 = vmatprep.subr.mxu0 0.0
        %456 = vmatpush1.msra.mxu0 %v430
        %457 = vmatprep.subr.mxu0 0.0
        %458 = vmatpush1.msra.mxu0 %v443
        %459 = vmatprep.subr.mxu0 0.0
        %460 = vmatpush1.msra.mxu0 0.0
        %461 = vmatprep.subr.mxu0 0.0
        %462 = vmatpush1.msra.mxu0 0.0
        %463 = vmatprep.subr.mxu0 0.0
        %464 = vmatpush1.msra.mxu0 0.0
        %465 = vmatprep.subr.mxu0 0.0
        %466 = vmatpush1.msra.mxu0 0.0
        %467 = vmatprep.subr.mxu0 0.0
        %468 = vmatpush1.msra.mxu0 0.0
        %469 = vmatprep.subr.mxu0 0.0
        %470 = vmatpush1.msra.mxu0 0.0
        %471 = vmatprep.subr.mxu0 0.0
        %472 = vmatpush1.msra.mxu0 0.0
        %473 = vmatprep.subr.mxu0 0.0
        %474 = vmatpush1.msra.mxu0 0.0
        %475 = vmatprep.subr.mxu0 0.0
        %476 = vmatpush1.msra.mxu0 0.0
        %477 = vmatprep.subr.mxu0 0.0
        %478 = vmatpush1.msra.mxu0 0.0
        %479 = vmatprep.subr.mxu0 0.0
        %480 = vmatpush1.msra.mxu0 0.0
        %481 = vmatprep.subr.mxu0 0.0
        %482 = vmatpush1.msra.mxu0 0.0
        %483 = vmatprep.subr.mxu0 0.0
        %484 = vmatpush1.msra.mxu0 0.0
        %485 = vmatprep.subr.mxu0 0.0
        %486 = vmatpush1.msra.mxu0 0.0
        %487 = vmatprep.subr.mxu0 0.0
        %488 = vmatpush1.msra.mxu0 0.0
        %489 = vmatprep.subr.mxu0 0.0
        %490 = vmatpush1.msra.mxu0 0.0
        %491 = vmatprep.subr.mxu0 0.0
        %492 = vmatpush1.msra.mxu0 0.0
        %493 = vmatprep.subr.mxu0 0.0
        %494 = vmatpush1.msra.mxu0 0.0
        %495 = vmatprep.subr.mxu0 0.0
        %496 = vmatpush1.msra.mxu0 0.0
        %497 = vmatprep.subr.mxu0 0.0
        %498 = vmatpush1.msra.mxu0 0.0
        %499 = vmatprep.subr.mxu0 0.0
        %500 = vmatpush1.msra.mxu0 0.0
        %501 = vmatprep.subr.mxu0 0.0
        %502 = vmatpush1.msra.mxu0 0.0
        %503 = vmatprep.subr.mxu0 0.0
        %504 = vmatpush1.msra.mxu0 0.0
        %505 = vmatprep.subr.mxu0 0.0
        %506 = vmatpush1.msra.mxu0 0.0
        %507 = vmatprep.subr.mxu0 0.0
        %508 = vmatpush1.msra.mxu0 0.0
        %509 = vmatprep.mubr.f32.mxu0 0.0
        %510 = vmatmul.mubr.f32.gmra.mrb[0].mxu0 %v440
        %v511 = vpop.f32.mrb[0].mxu0
        %v512 = vadd.f32 %v437, %v511
        %v513 = vpop.f32.mrb[0].mxu0
        %514 = vdwg.mxu0
        %v515 = vmax.f32 %v512, 0.0
        %v516 = vld [vmem:[%s7] sm:$0xff]
        %v517 = vld [vmem:[%s7 + $0x8] sm:$0xff]
        %v518 = vld [vmem:[%s7 + $0x10] sm:$0xff]
        %v519 = vld [vmem:[%s7 + $0x18] sm:$0xff]
        %v520 = vld [vmem:[%s7 + $0x20] sm:$0xff]
        %v521 = vld [vmem:[%s7 + $0x28] sm:$0xff]
        %v522 = vld [vmem:[%s7 + $0x30] sm:$0x3]
        %v524 = vsel %vm346, %v515, 0
        %v527 = vsel %vm350, %v522, 0
        %529 = vmatprep.subr.mxu0 0.0
        %530 = vmatpush1.msra.mxu0 %v516
        %531 = vmatprep.subr.mxu0 0.0
        %532 = vmatpush1.msra.mxu0 %v517
        %533 = vmatprep.subr.mxu0 0.0
        %534 = vmatpush1.msra.mxu0 %v518
        %535 = vmatprep.subr.mxu0 0.0
        %536 = vmatpush1.msra.mxu0 %v519
        %537 = vmatprep.subr.mxu0 0.0
        %538 = vmatpush1.msra.mxu0 %v520
        %539 = vmatprep.subr.mxu0 0.0
        %540 = vmatpush1.msra.mxu0 %v521
        %541 = vmatprep.subr.mxu0 0.0
        %542 = vmatpush1.msra.mxu0 %v527
        %543 = vmatprep.subr.mxu0 0.0
        %544 = vmatpush1.msra.mxu0 0.0
        %545 = vmatprep.subr.mxu0 0.0
        %546 = vmatpush1.msra.mxu0 0.0
        %547 = vmatprep.subr.mxu0 0.0
        %548 = vmatpush1.msra.mxu0 0.0
        %549 = vmatprep.subr.mxu0 0.0
        %550 = vmatpush1.msra.mxu0 0.0
        %551 = vmatprep.subr.mxu0 0.0
        %552 = vmatpush1.msra.mxu0 0.0
        %553 = vmatprep.subr.mxu0 0.0
        %554 = vmatpush1.msra.mxu0 0.0
        %555 = vmatprep.subr.mxu0 0.0
        %556 = vmatpush1.msra.mxu0 0.0
        %557 = vmatprep.subr.mxu0 0.0
        %558 = vmatpush1.msra.mxu0 0.0
        %559 = vmatprep.subr.mxu0 0.0
        %560 = vmatpush1.msra.mxu0 0.0
        %561 = vmatprep.subr.mxu0 0.0
        %562 = vmatpush1.msra.mxu0 0.0
        %563 = vmatprep.subr.mxu0 0.0
        %564 = vmatpush1.msra.mxu0 0.0
        %565 = vmatprep.subr.mxu0 0.0
        %566 = vmatpush1.msra.mxu0 0.0
        %567 = vmatprep.subr.mxu0 0.0
        %568 = vmatpush1.msra.mxu0 0.0
        %569 = vmatprep.subr.mxu0 0.0
        %570 = vmatpush1.msra.mxu0 0.0
        %571 = vmatprep.subr.mxu0 0.0
        %572 = vmatpush1.msra.mxu0 0.0
        %573 = vmatprep.subr.mxu0 0.0
        %574 = vmatpush1.msra.mxu0 0.0
        %575 = vmatprep.subr.mxu0 0.0
        %576 = vmatpush1.msra.mxu0 0.0
        %577 = vmatprep.subr.mxu0 0.0
        %578 = vmatpush1.msra.mxu0 0.0
        %579 = vmatprep.subr.mxu0 0.0
        %580 = vmatpush1.msra.mxu0 0.0
        %581 = vmatprep.subr.mxu0 0.0
        %582 = vmatpush1.msra.mxu0 0.0
        %583 = vmatprep.subr.mxu0 0.0
        %584 = vmatpush1.msra.mxu0 0.0
        %585 = vmatprep.subr.mxu0 0.0
        %586 = vmatpush1.msra.mxu0 0.0
        %587 = vmatprep.subr.mxu0 0.0
        %588 = vmatpush1.msra.mxu0 0.0
        %589 = vmatprep.subr.mxu0 0.0
        %590 = vmatpush1.msra.mxu0 0.0
        %591 = vmatprep.subr.mxu0 0.0
        %592 = vmatpush1.msra.mxu0 0.0
        %593 = vmatprep.mubr.f32.mxu0 0.0
        %594 = vmatmul.mubr.f32.gmra.mrb[0].mxu0 %v524
        %v595 = vpop.f32.mrb[0].mxu0
        %v596 = vadd.f32 0.0, %v595
        %v597 = vpop.f32.mrb[0].mxu0
        %598 = vdwg.mxu0
        %vm599 = vcmask 269312
        %600 = vst.msk [vmem:[%s296] sm:$0xff] %vm599, %v596
        %s601 = sand.u32 %s203, 1
        %s602 = scalar_lea.sflag [#allocation3], %s601
        %s603 = sand.u32 %s203, 1
        %s604 = smul.addr %s603, 8
        %s605 = scalar_lea.vmem [#allocation2], %s604
        // Predicated region
        $region53: #{tpu_custom_call.1} parent=51 // pred_check
          %p606 = pneg %p213
        $region54: #{tpu_custom_call.1} parent=51 // pred_check_branch
          %608 = sbr.rel (%p606) target = $region56
        $region55: #{tpu_custom_call.1} parent=51 // pred_region
          %s610 = ssub.s32 128, 128
          %611 = vsyncadd %s602, %s610
          %s612 = smul.addr %s22, 128
          %s613 = scalar_lea.hbm %s8, %s612
          %s615 = sshll.u32 %s605, 4
          %s616 = int_to_ptr.vmem [resolvable:$true] %s615
          %618 = dma.vmem_to_hbm [thread:$0]  %s616, 128, %s613, %s602
        $region56: #{tpu_custom_call.1} parent=51 // pred_fallthru
          _
      $region52: #{tpu_custom_call.1} parent=5 // pred_fallthru
        _
      %p619 = scmp.le.s32.totalorder 2, %s17
      // Predicated region
      $region57: #{tpu_custom_call.1} parent=5 // pred_check
        %p620 = pneg %p619
      $region58: #{tpu_custom_call.1} parent=5 // pred_check_branch
        %622 = sbr.rel (%p620) target = $region60
      $region59: #{tpu_custom_call.1} parent=5 // pred_region
        %s623 = ssub.s32 %s17, 2
        // Predicated region
        $region61: #{tpu_custom_call.1} parent=59 // pred_check
          %p624 = pneg %p219
        $region62: #{tpu_custom_call.1} parent=59 // pred_check_branch
          %626 = sbr.rel (%p624) target = $region64
        $region63: #{tpu_custom_call.1} parent=59 // pred_region
          %s627 = sand.u32 %s204, 1
          %s628 = scalar_lea.sflag [#allocation3], %s627
          %s629 = sand.u32 %s204, 1
          %s630 = smul.addr %s629, 8
          %s631 = scalar_lea.vmem [#allocation2], %s630
          %632 = dma.done %s628, 128
        $region64: #{tpu_custom_call.1} parent=59 // pred_fallthru
          _
      $region60: #{tpu_custom_call.1} parent=5 // pred_fallthru
        _
    $region6: #{tpu_custom_call.1} parent=1 // loop_footer
      %s21 = sadd.s32 1, %s17
    $region7: #{tpu_custom_call.1} parent=1 // loop_footer_branch
      %16 = sbr.rel target = $region3
    $region8: #{tpu_custom_call.1} parent=1 // loop_exit
      _
    %633 = vsyncpa [#allocation3], 1
    %s634 = scalar_lea.sflag [#allocation3], 1
    %635 = vsyncpa %s634, 1

</llo_original>
